<compile_context>
chip_gen: v7x
topology: tpu7x:2x2x1
jax: 0.10.0
libtpu: 0.0.40
codegen_flags: <defaults>
</compile_context>

<pallas_src>
import math

import jax
import jax.numpy as jnp
from jax.experimental import pallas as pl
from jax.experimental.pallas import tpu as pltpu


def _round_up(v, m):
    return ((v + m - 1) // m) * m


def _sublane_group(dtype):
    """Min sublane packing group for a dtype (8 for f32, 16 bf16, 32 int8/fp8)."""
    itemsize = jnp.dtype(dtype).itemsize
    return 8 * max(1, 4 // itemsize)


def _vmem_tile_bytes(rows, cols, dtype):
    """VMEM footprint of a (rows, cols) tile including lane/sublane layout padding."""
    itemsize = jnp.dtype(dtype).itemsize
    return (_round_up(max(rows, 1), _sublane_group(dtype))
            * _round_up(max(cols, 1), 128) * itemsize)


def _vmem_capacity_bytes():
    """Physical VMEM of the current chip; conservative 64 MiB fallback (v7x-safe)."""
    try:
        info = pltpu.get_tpu_info()
        cap = getattr(info, "vmem_capacity_bytes", None)
        if cap:
            return int(cap)
    except Exception:
        pass
    return 64 * 1024 * 1024


def token_embed_kernel(x_ref, w_ref, b_ref, o_ref):
    # x_ref: (TL, 3C)  im2col tile [x[t-1] | x[t] | x[t+1]] channels
    # w_ref: (3C, H)   fused conv taps, VMEM-resident (single-buffered)
    # b_ref: (1, H)    bias (f32), VMEM-resident (single-buffered)
    # o_ref: (TL, H)   output tile (exact H, no lane padding; Pallas masks
    #                  the ragged last seq tile's store)
    y = jnp.dot(x_ref[...], w_ref[...], preferred_element_type=jnp.float32)
    o_ref[...] = (y + b_ref[...]).astype(o_ref.dtype)


def token_embedding(x, conv_w, conv_b, *, seq_tile=None):
    """x: (B, L, C); conv_w: (H, C, 3); conv_b: (H,). Returns (B, L, H)."""
    B, L, C = x.shape
    H = conv_w.shape[0]
    C3 = 3 * C
    dtype = x.dtype
    itemsize = jnp.dtype(dtype).itemsize
    sub = _sublane_group(dtype)

    # Fused conv weight: (H, C, 3) -> (3, C, H) -> (3C, H); row k*C + c holds
    # conv_w[h, c, k], matching the im2col column order below.
    # (Cast to x.dtype; for bf16 inputs this rounds the weights — accumulation
    #  stays f32 via preferred_element_type.)
    w = jnp.transpose(conv_w, (2, 1, 0)).reshape(C3, H).astype(dtype)
    b = conv_b.reshape(1, H).astype(jnp.float32)

    # Host-side im2col to (B, L, 3C): [x[t-1], x[t], x[t+1]] with replicate
    # padding at the sequence ends (exactly nn.Conv1d padding_mode='replicate').
    x_pad = jnp.concatenate([x[:, :1], x, x[:, -1:]], axis=1)        # (B, L+2, C)
    cols = jnp.concatenate(
        [x_pad[:, 0:L], x_pad[:, 1:L + 1], x_pad[:, 2:L + 2]], axis=-1)  # (B, L, 3C)

    # --- VMEM budget / tile selection (layout-padding aware) ------------------
    vmem_cap = _vmem_capacity_bytes()
    # 96 MiB limit on 128-MiB-VMEM chips (v5e/v6e), 48 MiB on 64-MiB v7x.
    vmem_limit = min((vmem_cap * 3) // 4, 96 * 1024 * 1024)
    budget = vmem_limit // 2   # headroom for Mosaic internal scratch etc.

    # Weights/bias are single-buffered (pl.Buffered(1)) -> count once.
    resident = (_vmem_tile_bytes(C3, H, dtype)
                + _vmem_tile_bytes(1, H, jnp.float32))

    def _est(tl):
        stream = (_vmem_tile_bytes(tl, C3, dtype)      # im2col tile
                  + _vmem_tile_bytes(tl, H, dtype))    # output tile
        return 2 * stream + resident                   # x2: double-buffered streams

    if seq_tile is None:
        TL = min(2048, _round_up(max(L, 1), sub))
        while TL > sub and _est(TL) > budget:
            TL = max(sub, _round_up(TL // 2, sub))
    else:
        TL = max(sub, _round_up(int(seq_tile), sub))

    nL = pl.cdiv(L, TL)
    Lp = nL * TL
    # Only the tiny (width 3C) im2col tensor is padded to a tile multiple; the
    # output keeps its exact (B, L, H) shape and the ragged last seq tile's
    # store is masked by Pallas — no post-kernel slice / extra HBM pass.
    if Lp != L:
        cols = jnp.pad(cols, ((0, 0), (0, Lp - L), (0, 0)))

    flops = 2 * B * L * C3 * H
    bytes_accessed = (cols.size * itemsize + w.size * itemsize + b.size * 4
                      + B * L * H * itemsize)

    out = pl.pallas_call(
        token_embed_kernel,
        out_shape=jax.ShapeDtypeStruct((B, L, H), dtype),
        grid_spec=pltpu.PrefetchScalarGridSpec(
            num_scalar_prefetch=0,
            grid=(B, nL),
            in_specs=[
                pl.BlockSpec((None, TL, C3), lambda b_, j: (b_, j, 0)),
                pl.BlockSpec((C3, H), lambda b_, j: (0, 0),
                             pipeline_mode=pl.Buffered(1)),
                pl.BlockSpec((1, H), lambda b_, j: (0, 0),
                             pipeline_mode=pl.Buffered(1)),
            ],
            out_specs=pl.BlockSpec((None, TL, H), lambda b_, j: (b_, j, 0)),
        ),
        compiler_params=pltpu.CompilerParams(
            dimension_semantics=("parallel", "parallel"),
            vmem_limit_bytes=vmem_limit,
        ),
        cost_estimate=pl.CostEstimate(
            flops=flops, transcendentals=0, bytes_accessed=bytes_accessed),
    )(cols, w, b)
    return out


def _reference(x, conv_w, conv_b):
    """Pure-JAX reference of the PyTorch forward (replicate-pad conv1d)."""
    B, L, C = x.shape
    x_pad = jnp.concatenate([x[:, :1], x, x[:, -1:]], axis=1)           # (B, L+2, C)
    cols = jnp.stack([x_pad[:, k:k + L] for k in range(3)], axis=2)     # (B, L, 3, C)
    return jnp.einsum("btkc,hck->bth", cols, conv_w) + conv_b[None, None, :]


if __name__ == "__main__":
    n_in, n_hidden = 4, 32

    key = jax.random.PRNGKey(0)
    kx, kw, kb, kx2, kx3 = jax.random.split(key, 5)

    # Deterministic parameter init mimicking PyTorch Conv1d defaults:
    # uniform(-1/sqrt(fan_in), 1/sqrt(fan_in)), fan_in = n_in * kernel_size.
    fan_in = n_in * 3
    bound = 1.0 / math.sqrt(fan_in)
    conv_w = jax.random.uniform(kw, (n_hidden, n_in, 3), jnp.float32, -bound, bound)
    conv_b = jax.random.uniform(kb, (n_hidden,), jnp.float32, -bound, bound)
    # TODO(synk): self.linear = nn.Linear(n_in, n_hidden) exists in the module
    # but is unused in forward(), so it is intentionally not implemented.

    # Primary case: B=2, L=8, C=4 -> (2, 8, 32).
    x = jax.random.normal(kx, (2, 8, n_in), jnp.float32)
    out = jax.block_until_ready(token_embedding(x, conv_w, conv_b))
    ref = _reference(x, conv_w, conv_b)
    assert out.shape == (2, 8, n_hidden), out.shape
    assert jnp.allclose(out, ref, atol=1e-4, rtol=1e-4), "mismatch vs reference (L=8)"

    # Multi-tile case (exercises im2col correctness across tile boundaries).
    x2 = jax.random.normal(kx2, (2, 24, n_in), jnp.float32)
    out2 = jax.block_until_ready(token_embedding(x2, conv_w, conv_b, seq_tile=8))
    ref2 = _reference(x2, conv_w, conv_b)
    assert out2.shape == (2, 24, n_hidden)
    assert jnp.allclose(out2, ref2, atol=1e-4, rtol=1e-4), "mismatch vs reference (L=24, TL=8)"

    # Ragged-L case (exercises the masked partial store of the last seq tile).
    x3 = jax.random.normal(kx3, (2, 13, n_in), jnp.float32)
    out3 = jax.block_until_ready(token_embedding(x3, conv_w, conv_b, seq_tile=8))
    ref3 = _reference(x3, conv_w, conv_b)
    assert out3.shape == (2, 13, n_hidden)
    assert jnp.allclose(out3, ref3, atol=1e-4, rtol=1e-4), "mismatch vs reference (L=13, TL=8)"

    print("KERNEL_OK")
</pallas_src>

<mosaic_0001>
module attributes {stable_mosaic.version = 11 : i64} {
  func.func @token_embed_kernel(%arg0: i32, %arg1: i32, %arg2: memref<1x8x12xf32, #tpu.memory_space<vmem>>, %arg3: memref<12x32xf32, #tpu.memory_space<vmem>>, %arg4: memref<1x32xf32, #tpu.memory_space<vmem>>, %arg5: memref<1x8x32xf32, #tpu.memory_space<vmem>>) attributes {dimension_semantics = [#tpu.dimension_semantics<parallel>, #tpu.dimension_semantics<parallel>], iteration_bounds = array<i64: 2, 1>, scalar_prefetch = 0 : i64, scratch_operands = 0 : i64, tpu.core_type = #tpu.core_type<tc>, window_params = [{transform_indices = @transform_0, window_bounds = array<i64: 1, 8, 12>}, {pipeline_mode = #tpu.pipeline_mode<synchronous>, transform_indices = @transform_1, window_bounds = array<i64: 12, 32>}, {pipeline_mode = #tpu.pipeline_mode<synchronous>, transform_indices = @transform_2, window_bounds = array<i64: 1, 32>}, {transform_indices = @transform_3, window_bounds = array<i64: 1, 8, 32>}]} {
    %c0 = arith.constant 0 : index
    %c0_0 = arith.constant 0 : index
    %c0_1 = arith.constant 0 : index
    %0 = vector.load %arg2[%c0, %c0_0, %c0_1] : memref<1x8x12xf32, #tpu.memory_space<vmem>>, vector<1x8x12xf32>
    %1 = vector.shape_cast %0 : vector<1x8x12xf32> to vector<8x12xf32>
    %c0_2 = arith.constant 0 : index
    %c0_3 = arith.constant 0 : index
    %2 = vector.load %arg3[%c0_2, %c0_3] : memref<12x32xf32, #tpu.memory_space<vmem>>, vector<12x32xf32>
    %cst = arith.constant dense<0.000000e+00> : vector<8x32xf32>
    %3 = tpu.matmul %1, %2, %cst {dimension_numbers = #tpu.dot_dimension_numbers<[1], [0], [0], [1], [0, 0, 1, 1], [], []>} : vector<8x12xf32>, vector<12x32xf32>, vector<8x32xf32> -> vector<8x32xf32>
    %c0_4 = arith.constant 0 : index
    %c0_5 = arith.constant 0 : index
    %4 = vector.load %arg4[%c0_4, %c0_5] : memref<1x32xf32, #tpu.memory_space<vmem>>, vector<1x32xf32>
    %5 = vector.broadcast %4 : vector<1x32xf32> to vector<8x32xf32>
    %6 = arith.addf %3, %5 : vector<8x32xf32>
    %c0_6 = arith.constant 0 : index
    %c0_7 = arith.constant 0 : index
    %c0_8 = arith.constant 0 : index
    %7 = vector.load %arg5[%c0_6, %c0_7, %c0_8] : memref<1x8x32xf32, #tpu.memory_space<vmem>>, vector<1x8x32xf32>
    %8 = vector.shape_cast %7 : vector<1x8x32xf32> to vector<8x32xf32>
    %9 = vector.shape_cast %6 : vector<8x32xf32> to vector<1x8x32xf32>
    tpu.vector_store %arg5[%c0_6, %c0_7, %c0_8], %9 {strides = array<i32>} : memref<1x8x32xf32, #tpu.memory_space<vmem>>, vector<1x8x32xf32>,
    return
  }
  func.func @transform_0(%arg0: i32, %arg1: i32) -> (i32, i32, i32) {
    %c0_i32 = arith.constant 0 : i32
    %c0_i32_0 = arith.constant 0 : i32
    return %arg0, %arg1, %c0_i32 : i32, i32, i32
  }
  func.func @transform_1(%arg0: i32, %arg1: i32) -> (i32, i32) {
    %c0_i32 = arith.constant 0 : i32
    %c0_i32_0 = arith.constant 0 : i32
    %c0_i32_1 = arith.constant 0 : i32
    return %c0_i32, %c0_i32_0 : i32, i32
  }
  func.func @transform_2(%arg0: i32, %arg1: i32) -> (i32, i32) {
    %c0_i32 = arith.constant 0 : i32
    %c0_i32_0 = arith.constant 0 : i32
    %c0_i32_1 = arith.constant 0 : i32
    return %c0_i32, %c0_i32_0 : i32, i32
  }
  func.func @transform_3(%arg0: i32, %arg1: i32) -> (i32, i32, i32) {
    %c0_i32 = arith.constant 0 : i32
    %c0_i32_0 = arith.constant 0 : i32
    return %arg0, %arg1, %c0_i32 : i32, i32, i32
  }
}

</mosaic_0001>

<llo_original>
// kernel: tpu_custom_call.1
$region0: #{tpu_custom_call.1}
  #allocation0 [shape = 'u32[]', space=smem, size = 0x4, offset = 0x4, fixed_abs, tag = 'smem constant byte address 0x4 - core index']
  #allocation1 [shape = 'u32[144,128]{1,0:T(1,128)}', space=vmem, size = 0x12000, scoped, tag = 'internal scratch']
  %s0 = inlined_call_operand.hbm [shape: f32[2,8,12], index: 0, kind: input, shape index: {}]
  %s1 = inlined_call_operand.hbm [shape: f32[12,32], index: 1, kind: input, shape index: {}]
  %s2 = inlined_call_operand.vmem [shape: f32[1,32], index: 2, kind: input, shape index: {}]
  %s3 = inlined_call_operand.hbm [shape: f32[2,8,32], index: 3, kind: output, shape index: {}]
  %s4 = sld [smem:[#allocation0]]
  $region53: #{tpu_custom_call.1} parent=0
    _
  %s6 = ssub.s32 1, %s4
  %s7 = scalar_select 0, %s6, %s4
  $region1: #{tpu_custom_call.1} parent=0
    #allocation2 [shape = 'u8[8192]{0}', space=vmem, size = 0x2000, scoped, tag = 'input window, operand 0']
    #allocation3 [shape = 's32[2]{0}', space=sflag, size = 0x8, scoped, tag = 'scoped memory for tpu_custom_call.1']
    #allocation4 [shape = 's32[2]{0}', space=sflag, size = 0x8, scoped, tag = 'scoped memory for tpu_custom_call.1']
    #allocation5 [shape = 'u8[8192]{0}', space=vmem, size = 0x2000, scoped, tag = 'input window, operand 1, single buffered']
    #allocation6 [shape = 's32[1]{0}', space=sflag, size = 0x4, scoped, tag = 'scoped memory for tpu_custom_call.1']
    #allocation7 [shape = 'u8[8192]{0}', space=vmem, size = 0x2000, scoped, tag = 'output window, operand 0']
    %8 = vsyncpa [#allocation3], 0
    %s9 = scalar_lea.sflag [#allocation3], 1
    %10 = vsyncpa %s9, 0
    %11 = vsyncpa [#allocation6], 0
    %12 = vsyncpa [#allocation4], 0
    %s13 = scalar_lea.sflag [#allocation4], 1
    %14 = vsyncpa %s13, 0
    loop: start=0, step=1, limit=4
    $region2: #{tpu_custom_call.1} parent=1 // loop_pre_header
      _
    $region3: #{tpu_custom_call.1} parent=1 // loop_header
      %s16 = sphi 0, %s20
      %p17 = scmp.ge.s32.totalorder %s16, 4
      %s23 = sphi 0, %s35
      %s24 = sphi 0, %s31
      %s25 = sphi 0, %s23
      %s26 = sphi 0, %s24
      %s27 = sphi 0, %s25
      %s28 = sphi 0, %s26
      %s40 = sphi 0, %s42
      %s43 = sphi 0, %s40
      %s44 = sphi 0, %s43
      %s60 = sphi 0, %s44
      %s64 = sphi 0, %s64
      %s66 = sphi 0, %s64
      %s67 = sphi 0, %s66
      %s81 = sphi 0, %s67
      %s85 = sphi 0, %s85
      %s87 = sphi 0, %s85
      %s88 = sphi 0, %s87
      %s102 = sphi 0, %s88
      %s110 = sphi 0, %s112
      %s113 = sphi 0, %s110
      %s114 = sphi 0, %s113
      %s130 = sphi 0, %s114
    $region4: #{tpu_custom_call.1} parent=1 // loop_header_branch
      %19 = sbr.rel (%p17) target = $region8
    $region5: #{tpu_custom_call.1} parent=1 // loop_body
      %s21 = ssub.s32 %s16, 1
      %s22 = ssub.s32 %s16, 2
      %s29 = sadd.s32 1, %s24
      %p30 = scmp.ge.s32.totalorder %s29, 1
      %s31 = scalar_select %p30, 0, %s29
      %s32 = sadd.s32 1, %s23
      %s33 = scalar_select %p30, %s32, %s23
      %p34 = scmp.ge.s32.totalorder %s33, 2
      %s35 = scalar_select %p34, 0, %s33
      %s36 = ssub.s32 %s23, %s35
      %s37 = ssub.s32 %s24, %s31
      %s38 = sor.u32 %s36, %s37
      %p39 = scmp.eq.s32.totalorder %s38, 0
      %s41 = sadd.s32 %s40, 1
      %s42 = scalar_select %p39, %s40, %s41
      %p45 = pneg %p39
      %p46 = scmp.eq.s32.totalorder %s16, 1
      %p47 = por %p45, %p46
      %p48 = scmp.ne.s32.totalorder %s40, %s43
      %p49 = scmp.eq.s32.totalorder %s16, 0
      %p50 = por %p48, %p49
      %p51 = scmp.ne.s32.totalorder %s40, %s43
      %p52 = scmp.eq.s32.totalorder %s21, 1
      %p53 = por %p51, %p52
      %p54 = scmp.ne.s32.totalorder %s43, %s44
      %p55 = scmp.eq.s32.totalorder %s21, 0
      %p56 = por %p54, %p55
      %p57 = scmp.ne.s32.totalorder %s43, %s44
      %p58 = scmp.eq.s32.totalorder %s22, 1
      %p59 = por %p57, %p58
      %p61 = scmp.ne.s32.totalorder %s44, %s60
      %p62 = scmp.eq.s32.totalorder %s22, 0
      %p63 = por %p61, %p62
      %s65 = sadd.s32 %s64, 1
      %p68 = scmp.eq.s32.totalorder %s16, 1
      %p69 = scmp.ne.s32.totalorder %s64, %s66
      %p70 = scmp.eq.s32.totalorder %s16, 0
      %p71 = por %p69, %p70
      %p72 = scmp.ne.s32.totalorder %s64, %s66
      %p73 = scmp.eq.s32.totalorder %s21, 1
      %p74 = por %p72, %p73
      %p75 = scmp.ne.s32.totalorder %s66, %s67
      %p76 = scmp.eq.s32.totalorder %s21, 0
      %p77 = por %p75, %p76
      %p78 = scmp.ne.s32.totalorder %s66, %s67
      %p79 = scmp.eq.s32.totalorder %s22, 1
      %p80 = por %p78, %p79
      %p82 = scmp.ne.s32.totalorder %s67, %s81
      %p83 = scmp.eq.s32.totalorder %s22, 0
      %p84 = por %p82, %p83
      %s86 = sadd.s32 %s85, 1
      %p89 = scmp.eq.s32.totalorder %s16, 1
      %p90 = scmp.ne.s32.totalorder %s85, %s87
      %p91 = scmp.eq.s32.totalorder %s16, 0
      %p92 = por %p90, %p91
      %p93 = scmp.ne.s32.totalorder %s85, %s87
      %p94 = scmp.eq.s32.totalorder %s21, 1
      %p95 = por %p93, %p94
      %p96 = scmp.ne.s32.totalorder %s87, %s88
      %p97 = scmp.eq.s32.totalorder %s21, 0
      %p98 = por %p96, %p97
      %p99 = scmp.ne.s32.totalorder %s87, %s88
      %p100 = scmp.eq.s32.totalorder %s22, 1
      %p101 = por %p99, %p100
      %p103 = scmp.ne.s32.totalorder %s88, %s102
      %p104 = scmp.eq.s32.totalorder %s22, 0
      %p105 = por %p103, %p104
      %s106 = ssub.s32 %s23, %s35
      %s107 = ssub.s32 %s24, %s31
      %s108 = sor.u32 %s106, %s107
      %p109 = scmp.eq.s32.totalorder %s108, 0
      %s111 = sadd.s32 %s110, 1
      %s112 = scalar_select %p109, %s110, %s111
      %p115 = pneg %p109
      %p116 = scmp.eq.s32.totalorder %s16, 1
      %p117 = por %p115, %p116
      %p118 = scmp.ne.s32.totalorder %s110, %s113
      %p119 = scmp.eq.s32.totalorder %s16, 0
      %p120 = por %p118, %p119
      %p121 = scmp.ne.s32.totalorder %s110, %s113
      %p122 = scmp.eq.s32.totalorder %s21, 1
      %p123 = por %p121, %p122
      %p124 = scmp.ne.s32.totalorder %s113, %s114
      %p125 = scmp.eq.s32.totalorder %s21, 0
      %p126 = por %p124, %p125
      %p127 = scmp.ne.s32.totalorder %s113, %s114
      %p128 = scmp.eq.s32.totalorder %s22, 1
      %p129 = por %p127, %p128
      %p131 = scmp.ne.s32.totalorder %s114, %s130
      %p132 = scmp.eq.s32.totalorder %s22, 0
      %p133 = por %p131, %p132
      %p134 = scmp.le.s32.totalorder 1, %s16
      %p135 = scmp.lt.s32.totalorder %s16, 3
      %p136 = pnand %p134, %p135
      %p137 = pneg %p136
      // Predicated region
      $region9: #{tpu_custom_call.1} parent=5 // pred_check
        _
      $region10: #{tpu_custom_call.1} parent=5 // pred_check_branch
        %139 = sbr.rel (%p136) target = $region12
      $region11: #{tpu_custom_call.1} parent=5 // pred_region
        %s140 = ssub.s32 %s16, 1
        // Predicated region
        $region13: #{tpu_custom_call.1} parent=11 // pred_check
          %p141 = pneg %p77
        $region14: #{tpu_custom_call.1} parent=11 // pred_check_branch
          %143 = sbr.rel (%p141) target = $region16
        $region15: #{tpu_custom_call.1} parent=11 // pred_region
          %s145 = ssub.s32 256, 256
          %146 = vsyncadd [#allocation6], %s145
          %s147 = sshll.u32 [#allocation5], 4
          %s148 = int_to_ptr.vmem [resolvable:$true] %s147
          %153 = dma.hbm_to_vmem [thread:$0]  %s1, 256, %s148, [#allocation6], 128, 128, 8
        $region16: #{tpu_custom_call.1} parent=11 // pred_fallthru
          _
        // Predicated region
        $region17: #{tpu_custom_call.1} parent=11 // pred_check
          %p154 = pneg %p98
        $region18: #{tpu_custom_call.1} parent=11 // pred_check_branch
          %156 = sbr.rel (%p154) target = $region20
        $region19: #{tpu_custom_call.1} parent=11 // pred_region
          _
        $region20: #{tpu_custom_call.1} parent=11 // pred_fallthru
          _
      $region12: #{tpu_custom_call.1} parent=5 // pred_fallthru
        _
      %p157 = scmp.lt.s32.totalorder %s16, 2
      // Predicated region
      $region21: #{tpu_custom_call.1} parent=5 // pred_check
        %p158 = pneg %p157
      $region22: #{tpu_custom_call.1} parent=5 // pred_check_branch
        %160 = sbr.rel (%p158) target = $region24
      $region23: #{tpu_custom_call.1} parent=5 // pred_region
        // Predicated region
        $region25: #{tpu_custom_call.1} parent=23 // pred_check
          %p161 = pneg %p50
        $region26: #{tpu_custom_call.1} parent=23 // pred_check_branch
          %163 = sbr.rel (%p161) target = $region28
        $region27: #{tpu_custom_call.1} parent=23 // pred_region
          %s164 = sand.u32 %s40, 1
          %s165 = scalar_lea.sflag [#allocation3], %s164
          %s166 = sand.u32 %s40, 1
          %s167 = smul.addr %s166, 8
          %s168 = scalar_lea.vmem [#allocation2], %s167
          %s170 = ssub.s32 128, 128
          %171 = vsyncadd %s165, %s170
          %s172 = sadd.s32 %s24, %s23
          %s173 = smul.addr %s172, 128
          %s174 = scalar_lea.hbm %s0, %s173
          %s176 = sshll.u32 %s168, 4
          %s177 = int_to_ptr.vmem [resolvable:$true] %s176
          %179 = dma.hbm_to_vmem [thread:$0]  %s174, 128, %s177, %s165
        $region28: #{tpu_custom_call.1} parent=23 // pred_fallthru
          _
      $region24: #{tpu_custom_call.1} parent=5 // pred_fallthru
        _
      %p180 = scmp.le.s32.totalorder 1, %s16
      %p181 = scmp.lt.s32.totalorder %s16, 3
      %p182 = pnand %p180, %p181
      %p183 = pneg %p182
      // Predicated region
      $region29: #{tpu_custom_call.1} parent=5 // pred_check
        _
      $region30: #{tpu_custom_call.1} parent=5 // pred_check_branch
        %185 = sbr.rel (%p182) target = $region32
      $region31: #{tpu_custom_call.1} parent=5 // pred_region
        %s186 = ssub.s32 %s16, 1
        %s187 = sand.u32 %s43, 1
        %s188 = scalar_lea.sflag [#allocation3], %s187
        %s189 = sand.u32 %s43, 1
        %s190 = smul.addr %s189, 8
        %s191 = scalar_lea.vmem [#allocation2], %s190
        // Predicated region
        $region33: #{tpu_custom_call.1} parent=31 // pred_check
          %p192 = pneg %p56
        $region34: #{tpu_custom_call.1} parent=31 // pred_check_branch
          %194 = sbr.rel (%p192) target = $region36
        $region35: #{tpu_custom_call.1} parent=31 // pred_region
          %195 = dma.done %s188, 128
        $region36: #{tpu_custom_call.1} parent=31 // pred_fallthru
          _
        // Predicated region
        $region37: #{tpu_custom_call.1} parent=31 // pred_check
          %p196 = pneg %p77
        $region38: #{tpu_custom_call.1} parent=31 // pred_check_branch
          %198 = sbr.rel (%p196) target = $region40
        $region39: #{tpu_custom_call.1} parent=31 // pred_region
          %199 = dma.done [#allocation6], 256
        $region40: #{tpu_custom_call.1} parent=31 // pred_fallthru
          _
        %s200 = sand.u32 %s43, 1
        %s201 = scalar_lea.sflag [#allocation3], %s200
        %s202 = sand.u32 %s43, 1
        %s203 = smul.addr %s202, 8
        %s204 = scalar_lea.vmem [#allocation2], %s203
        %p205 = pneg %p56
        %p206 = pneg %p53
        %p207 = pneg %p77
        %p208 = pneg %p74
        %p209 = pneg %p98
        %p210 = pneg %p95
        %p211 = pneg %p126
        %p212 = pneg %p123
        %s213 = sand.u32 %s113, 1
        %s214 = scalar_lea.sflag [#allocation4], %s213
        %s215 = sand.u32 %s113, 1
        %s216 = smul.addr %s215, 8
        %s217 = scalar_lea.vmem [#allocation7], %s216
        %v218 = vld [vmem:[%s191] sm:$0xff]
        %v219 = vld [vmem:[#allocation5] sm:$0xff]
        %v220 = vld [vmem:[#allocation5 + $0x8] sm:$0xf]
        %v221 = vld [vmem:[%s2] sm:$0x1]
        %v223 = vlaneseq
        %v224 = vshrl.u32 %v223, 7
        %v225 = vsub.s32 0, %v224
        %v226 = vrot.slane %v221, %v225
        %vm228 = vcmask 97280
        %v230 = vsel %vm228, %v218, 0
        %vm232 = vcmask 1043456
        %v234 = vsel %vm232, %v220, 0
        %236 = vmatprep.subr.mxu0 0.0
        %237 = vmatpush1.msra.mxu0 %v219
        %238 = vmatprep.subr.mxu0 0.0
        %239 = vmatpush1.msra.mxu0 %v234
        %240 = vmatprep.subr.mxu0 0.0
        %241 = vmatpush1.msra.mxu0 0.0
        %242 = vmatprep.subr.mxu0 0.0
        %243 = vmatpush1.msra.mxu0 0.0
        %244 = vmatprep.subr.mxu0 0.0
        %245 = vmatpush1.msra.mxu0 0.0
        %246 = vmatprep.subr.mxu0 0.0
        %247 = vmatpush1.msra.mxu0 0.0
        %248 = vmatprep.subr.mxu0 0.0
        %249 = vmatpush1.msra.mxu0 0.0
        %250 = vmatprep.subr.mxu0 0.0
        %251 = vmatpush1.msra.mxu0 0.0
        %252 = vmatprep.subr.mxu0 0.0
        %253 = vmatpush1.msra.mxu0 0.0
        %254 = vmatprep.subr.mxu0 0.0
        %255 = vmatpush1.msra.mxu0 0.0
        %256 = vmatprep.subr.mxu0 0.0
        %257 = vmatpush1.msra.mxu0 0.0
        %258 = vmatprep.subr.mxu0 0.0
        %259 = vmatpush1.msra.mxu0 0.0
        %260 = vmatprep.subr.mxu0 0.0
        %261 = vmatpush1.msra.mxu0 0.0
        %262 = vmatprep.subr.mxu0 0.0
        %263 = vmatpush1.msra.mxu0 0.0
        %264 = vmatprep.subr.mxu0 0.0
        %265 = vmatpush1.msra.mxu0 0.0
        %266 = vmatprep.subr.mxu0 0.0
        %267 = vmatpush1.msra.mxu0 0.0
        %268 = vmatprep.subr.mxu0 0.0
        %269 = vmatpush1.msra.mxu0 0.0
        %270 = vmatprep.subr.mxu0 0.0
        %271 = vmatpush1.msra.mxu0 0.0
        %272 = vmatprep.subr.mxu0 0.0
        %273 = vmatpush1.msra.mxu0 0.0
        %274 = vmatprep.subr.mxu0 0.0
        %275 = vmatpush1.msra.mxu0 0.0
        %276 = vmatprep.subr.mxu0 0.0
        %277 = vmatpush1.msra.mxu0 0.0
        %278 = vmatprep.subr.mxu0 0.0
        %279 = vmatpush1.msra.mxu0 0.0
        %280 = vmatprep.subr.mxu0 0.0
        %281 = vmatpush1.msra.mxu0 0.0
        %282 = vmatprep.subr.mxu0 0.0
        %283 = vmatpush1.msra.mxu0 0.0
        %284 = vmatprep.subr.mxu0 0.0
        %285 = vmatpush1.msra.mxu0 0.0
        %286 = vmatprep.subr.mxu0 0.0
        %287 = vmatpush1.msra.mxu0 0.0
        %288 = vmatprep.subr.mxu0 0.0
        %289 = vmatpush1.msra.mxu0 0.0
        %290 = vmatprep.subr.mxu0 0.0
        %291 = vmatpush1.msra.mxu0 0.0
        %292 = vmatprep.subr.mxu0 0.0
        %293 = vmatpush1.msra.mxu0 0.0
        %294 = vmatprep.subr.mxu0 0.0
        %295 = vmatpush1.msra.mxu0 0.0
        %296 = vmatprep.subr.mxu0 0.0
        %297 = vmatpush1.msra.mxu0 0.0
        %298 = vmatprep.subr.mxu0 0.0
        %299 = vmatpush1.msra.mxu0 0.0
        %300 = vmatprep.mubr.f32.mxu0 0.0
        %301 = vmatmul.mubr.f32.gmra.mrb[0].mxu0 %v230
        %v302 = vpop.f32.mrb[0].mxu0
        %v303 = vadd.f32 %v226, %v302
        %v304 = vpop.f32.mrb[0].mxu0
        %305 = vdwg.mxu0
        %vm306 = vcmask 261120
        %307 = vst.msk [vmem:[%s217] sm:$0xff] %vm306, %v303
        %s308 = sand.u32 %s113, 1
        %s309 = scalar_lea.sflag [#allocation4], %s308
        %s310 = sand.u32 %s113, 1
        %s311 = smul.addr %s310, 8
        %s312 = scalar_lea.vmem [#allocation7], %s311
        // Predicated region
        $region41: #{tpu_custom_call.1} parent=31 // pred_check
          %p313 = pneg %p123
        $region42: #{tpu_custom_call.1} parent=31 // pred_check_branch
          %315 = sbr.rel (%p313) target = $region44
        $region43: #{tpu_custom_call.1} parent=31 // pred_region
          %s317 = ssub.s32 128, 128
          %318 = vsyncadd %s309, %s317
          %s319 = sadd.s32 %s26, %s25
          %s320 = smul.addr %s319, 128
          %s321 = scalar_lea.hbm %s3, %s320
          %s323 = sshll.u32 %s312, 4
          %s324 = int_to_ptr.vmem [resolvable:$true] %s323
          %326 = dma.vmem_to_hbm [thread:$0]  %s324, 128, %s321, %s309
        $region44: #{tpu_custom_call.1} parent=31 // pred_fallthru
          _
      $region32: #{tpu_custom_call.1} parent=5 // pred_fallthru
        _
      %p327 = scmp.le.s32.totalorder 2, %s16
      // Predicated region
      $region45: #{tpu_custom_call.1} parent=5 // pred_check
        %p328 = pneg %p327
      $region46: #{tpu_custom_call.1} parent=5 // pred_check_branch
        %330 = sbr.rel (%p328) target = $region48
      $region47: #{tpu_custom_call.1} parent=5 // pred_region
        %s331 = ssub.s32 %s16, 2
        // Predicated region
        $region49: #{tpu_custom_call.1} parent=47 // pred_check
          %p332 = pneg %p129
        $region50: #{tpu_custom_call.1} parent=47 // pred_check_branch
          %334 = sbr.rel (%p332) target = $region52
        $region51: #{tpu_custom_call.1} parent=47 // pred_region
          %s335 = sand.u32 %s114, 1
          %s336 = scalar_lea.sflag [#allocation4], %s335
          %s337 = sand.u32 %s114, 1
          %s338 = smul.addr %s337, 8
          %s339 = scalar_lea.vmem [#allocation7], %s338
          %340 = dma.done %s336, 128
        $region52: #{tpu_custom_call.1} parent=47 // pred_fallthru
          _
      $region48: #{tpu_custom_call.1} parent=5 // pred_fallthru
        _
    $region6: #{tpu_custom_call.1} parent=1 // loop_footer
      %s20 = sadd.s32 1, %s16
    $region7: #{tpu_custom_call.1} parent=1 // loop_footer_branch
      %15 = sbr.rel target = $region3
    $region8: #{tpu_custom_call.1} parent=1 // loop_exit
      _
    %341 = vsyncpa [#allocation3], 1
    %s342 = scalar_lea.sflag [#allocation3], 1
    %343 = vsyncpa %s342, 1
    %344 = vsyncpa [#allocation6], 1
    %345 = vsyncpa [#allocation4], 1
    %s346 = scalar_lea.sflag [#allocation4], 1
    %347 = vsyncpa %s346, 1

</llo_original>
